<compile_context>
chip_gen: v7x
topology: tpu7x:2x2x1
jax: 0.10.0
libtpu: 0.0.40
codegen_flags: <defaults>
</compile_context>

<pallas_src>
import functools

import jax
import jax.numpy as jnp
from jax.experimental import pallas as pl
from jax.experimental.pallas import tpu as pltpu


# ----------------------------------------------------------------------------- kernel
def _seq_ntl_kernel(*refs, num_trans, trans_type, seq_len, trans_hidden):
    """One grid step = one block of TB batch rows (passed flattened as (TB*L, D))."""
    K, L, H = num_trans, seq_len, trans_hidden
    KH = K * H

    if trans_type == "mul":
        (x_ref, w1_ref, b1_ref, w2bd_ref, b2c_ref,
         w2big_ref, c2big_ref, we2bd_ref, be2c_ref, out_ref) = refs
    else:
        (x_ref, w1_ref, b1_ref,
         w2big_ref, c2big_ref, we2bd_ref, be2c_ref, out_ref) = refs

    x = x_ref[...]                                   # (M, D) = (TB*L, D), bf16
    M = x.shape[0]
    TB = M // L

    # Fused first layers: all K transform layer-1's + encoder layer-1 on raw x.
    # pre[:, :K*H]  -> pre-activation transform hiddens (k-major)
    # pre[:, K*H:]  -> xe_b = x @ we1 + be1 (encoder pre-activation of untransformed x)
    pre = jnp.dot(x, w1_ref[...], preferred_element_type=jnp.float32) + b1_ref[...]

    if trans_type == "mul":
        # sigmoid(mask) * x cannot be folded; run the K second layers as ONE
        # block-diagonal matmul, then feed the encoder first layer as a block matmul.
        h1 = jnp.maximum(pre[:, :KH], 0.0).astype(x.dtype)              # (M, K*H)
        xe = pre[:, KH:]                                                # (M, He) f32
        mask = jnp.dot(h1, w2bd_ref[...],
                       preferred_element_type=jnp.float32) + b2c_ref[...]   # (M, K*D)
        xt = jax.nn.sigmoid(mask) * jnp.concatenate([x] * K, axis=1)    # (M, K*D) f32
        g = jnp.concatenate([xt, xe], axis=1)                           # (M, K*D + He)
    else:
        # residual / forward: transform second layer is folded (host-side) into the
        # block matrix w2big; ReLU only the K*H transform lanes, pass xe_b through raw.
        lane = jax.lax.broadcasted_iota(jnp.int32, pre.shape, 1)
        g = jnp.where(lane < KH, jnp.maximum(pre, 0.0), pre)            # (M, K*H + He)

    # All K+1 encoder hiddens in a single block-matrix matmul.
    he = jnp.maximum(
        jnp.dot(g.astype(x.dtype), w2big_ref[...],
                preferred_element_type=jnp.float32) + c2big_ref[...],
        0.0)                                                            # (M, (K+1)*He)

    # Sequence reduction (1/L already folded into we2bd host-side).
    C = he.shape[-1]
    hs = jnp.sum(he.reshape(TB, L, C), axis=1)                          # (TB, (K+1)*He)

    # Encoder second layer for all K+1 slots at once -> lane-packed output tile.
    z = jnp.dot(hs, we2bd_ref[...],
                preferred_element_type=jnp.float32) + be2c_ref[...]     # (TB, (K+1)*Z)
    out_ref[...] = z


# ----------------------------------------------------------------------------- weight prep
def _prepare_weights(params, K, L, trans_type, compute_dtype):
    """Host-side fusion / folding of the module weights into block matrices."""
    w1, b1, w2, b2, we1, be1, we2, be2 = [p.astype(jnp.float32) for p in params]
    _, D, H = w1.shape
    He, Z = we2.shape
    C = (K + 1) * He

    # Fused first layer: [w1_0 | ... | w1_{K-1} | we1]  -> (D, K*H + He)
    w1_big = jnp.concatenate(
        [jnp.transpose(w1, (1, 0, 2)).reshape(D, K * H), we1], axis=1)
    b1_big = jnp.concatenate([b1.reshape(1, K * H), be1.reshape(1, He)], axis=1)

    w2_bd = None
    b2_cat = None
    if trans_type == "mul":
        # Block-diagonal transform second layer: (K*H, K*D), bias (1, K*D).
        w2_bd = jnp.zeros((K * H, K * D), jnp.float32)
        for k in range(K):
            w2_bd = w2_bd.at[k * H:(k + 1) * H, k * D:(k + 1) * D].set(w2[k])
        b2_cat = b2.reshape(1, K * D)
        # Encoder layer-1 block matrix over g = [xt_all | xe_b].
        w2_big = jnp.zeros((K * D + He, C), jnp.float32)
        w2_big = w2_big.at[K * D:, 0:He].set(jnp.eye(He))       # slot 0 pass-through
        c2_big = jnp.zeros((1, C), jnp.float32)
        for k in range(K):
            w2_big = w2_big.at[k * D:(k + 1) * D,
                               (k + 1) * He:(k + 2) * He].set(we1)
            c2_big = c2_big.at[:, (k + 1) * He:(k + 2) * He].set(be1.reshape(1, He))
    else:
        # Fold trans layer-2 into encoder layer-1: wf[k] = w2[k] @ we1.
        # g = [relu(x@w1+b1) | xe_b] with xe_b = x @ we1 + be1 (be1 already included).
        w2_big = jnp.zeros((K * H + He, C), jnp.float32)
        w2_big = w2_big.at[K * H:, 0:He].set(jnp.eye(He))       # slot 0 pass-through
        c2_big = jnp.zeros((1, C), jnp.float32)
        for k in range(K):
            w2_big = w2_big.at[k * H:(k + 1) * H,
                               (k + 1) * He:(k + 2) * He].set(w2[k] @ we1)
            cf = b2[k].reshape(1, D) @ we1
            if trans_type == "forward":
                cf = cf + be1.reshape(1, He)                    # no xe_b added
            else:  # residual: xe_b (which carries be1) is added via identity block
                w2_big = w2_big.at[K * H:, (k + 1) * He:(k + 2) * He].set(jnp.eye(He))
            c2_big = c2_big.at[:, (k + 1) * He:(k + 2) * He].set(cf)

    # Encoder second layer, block-diagonal over K+1 slots, with the 1/L mean folded in.
    we2_bd = jnp.zeros((C, (K + 1) * Z), jnp.float32)
    for s in range(K + 1):
        we2_bd = we2_bd.at[s * He:(s + 1) * He, s * Z:(s + 1) * Z].set(we2 / L)
    be2_cat = jnp.tile(be2.reshape(1, Z), (1, K + 1))

    cd = compute_dtype
    w1_big = w1_big.astype(cd)
    w2_big = w2_big.astype(cd)
    if w2_bd is not None:
        w2_bd = w2_bd.astype(cd)
    return w1_big, b1_big, w2_bd, b2_cat, w2_big, c2_big, we2_bd, be2_cat


# ----------------------------------------------------------------------------- wrapper
def seq_neutral_ad_forward(x, params, *, trans_type="residual", block_b=512,
                           compute_dtype=jnp.bfloat16):
    """x: (B, L, D) -> zs: (B, num_trans + 1, z_dim), float32."""
    B, L, D = x.shape
    K, _, H = params[0].shape
    He, Z = params[6].shape
    OZ = (K + 1) * Z
    C = (K + 1) * He

    # Batch tile: multiple of 8; force >= 2 grid steps when possible so the
    # "parallel" axis can shard across both TensorCores on v7x.
    TB = max(8, min(block_b, pl.cdiv(B, 8) * 8))
    TB = (TB // 8) * 8
    Bp = pl.cdiv(B, TB) * TB
    if Bp // TB < 2 and Bp >= 16:
        TB = max(8, ((Bp // 2) // 8) * 8)
        Bp = pl.cdiv(B, TB) * TB
    grid = (Bp // TB,)

    xf = x.astype(jnp.float32)
    if Bp != B:
        xf = jnp.pad(xf, ((0, Bp - B), (0, 0), (0, 0)))
    # Host-side flatten (free, contiguous) -> kernel blocks are native 2-D tiles.
    x_flat = xf.reshape(Bp * L, D).astype(compute_dtype)

    (w1_big, b1_big, w2_bd, b2_cat,
     w2_big, c2_big, we2_bd, be2_cat) = _prepare_weights(
        params, K, L, trans_type, compute_dtype)

    Hplus = K * H + He
    g_rows = (K * D + He) if trans_type == "mul" else Hplus

    in_specs = [
        pl.BlockSpec((TB * L, D), lambda b: (b, 0)),   # x (flattened block)
        pl.BlockSpec((D, Hplus), lambda b: (0, 0)),    # fused first-layer W
        pl.BlockSpec((1, Hplus), lambda b: (0, 0)),    # fused first-layer b
    ]
    operands = [x_flat, w1_big, b1_big]
    if trans_type == "mul":
        in_specs += [
            pl.BlockSpec((K * H, K * D), lambda b: (0, 0)),   # block-diag trans W2
            pl.BlockSpec((1, K * D), lambda b: (0, 0)),       # trans b2 (flattened)
        ]
        operands += [w2_bd, b2_cat]
    in_specs += [
        pl.BlockSpec((g_rows, C), lambda b: (0, 0)),   # encoder layer-1 block matrix
        pl.BlockSpec((1, C), lambda b: (0, 0)),        # its bias
        pl.BlockSpec((C, OZ), lambda b: (0, 0)),       # encoder layer-2 block-diag (w/ 1/L)
        pl.BlockSpec((1, OZ), lambda b: (0, 0)),       # encoder layer-2 bias (tiled)
    ]
    operands += [w2_big, c2_big, we2_bd, be2_cat]

    kernel = functools.partial(_seq_ntl_kernel, num_trans=K, trans_type=trans_type,
                               seq_len=L, trans_hidden=H)

    grid_spec = pltpu.PrefetchScalarGridSpec(
        num_scalar_prefetch=0,
        grid=grid,
        in_specs=in_specs,
        out_specs=pl.BlockSpec((TB, OZ), lambda b: (b, 0)),   # lane-packed output
    )

    out = pl.pallas_call(
        kernel,
        out_shape=jax.ShapeDtypeStruct((Bp, OZ), jnp.float32),
        grid_spec=grid_spec,
        compiler_params=pltpu.CompilerParams(
            dimension_semantics=("parallel",),       # independent batch blocks
            vmem_limit_bytes=48 * 1024 * 1024,       # allow large tiles (v5e default is 16 MiB)
        ),
    )(*operands)

    # (Bp, (K+1)*Z) -> (B, K+1, Z): free reshape + un-pad (no transpose).
    return out.reshape(Bp, K + 1, Z)[:B]


# ----------------------------------------------------------------------------- reference
def seq_neutral_ad_reference(x, params, *, trans_type="residual"):
    x = x.astype(jnp.float32)
    w1, b1, w2, b2, we1, be1, we2, be2 = [p.astype(jnp.float32) for p in params]
    B, L, D = x.shape
    K = w1.shape[0]

    def trans_i(i, xx):
        h = jnp.maximum(jnp.einsum("bld,dh->blh", xx, w1[i]) + b1[i], 0.0)
        return jnp.einsum("blh,hd->bld", h, w2[i]) + b2[i]

    xts = []
    for i in range(K):
        m = trans_i(i, x)
        if trans_type == "forward":
            xts.append(m)
        elif trans_type == "mul":
            xts.append(jax.nn.sigmoid(m) * x)
        else:
            xts.append(m + x)
    x_cat = jnp.concatenate([x[:, None], jnp.stack(xts, axis=1)], axis=1)  # (B, K+1, L, D)

    flat = x_cat.reshape(-1, L, D)
    h = jnp.maximum(jnp.einsum("nld,dh->nlh", flat, we1) + be1, 0.0)
    hm = jnp.mean(h, axis=1)
    zs = hm @ we2 + be2
    return zs.reshape(B, K + 1, we2.shape[1])


# ----------------------------------------------------------------------------- main
def _make_params(key, D, H, He, Z, K):
    ks = jax.random.split(key, 8)
    s = 0.1
    w1 = s * jax.random.normal(ks[0], (K, D, H), jnp.float32)
    b1 = s * jax.random.normal(ks[1], (K, 1, H), jnp.float32)
    w2 = s * jax.random.normal(ks[2], (K, H, D), jnp.float32)
    b2 = s * jax.random.normal(ks[3], (K, 1, D), jnp.float32)
    we1 = s * jax.random.normal(ks[4], (D, He), jnp.float32)
    be1 = s * jax.random.normal(ks[5], (1, He), jnp.float32)
    we2 = s * jax.random.normal(ks[6], (He, Z), jnp.float32)
    be2 = s * jax.random.normal(ks[7], (1, Z), jnp.float32)
    return (w1, b1, w2, b2, we1, be1, we2, be2)


if __name__ == "__main__":
    B, L, D = 10, 8, 16         # batch, seq_len, feature dim (x_dim)
    H, He = 32, 32              # trans / enc hidden widths
    Z = 16                      # latent_dim
    K = 4                       # num_trans

    key = jax.random.PRNGKey(0)
    kx, kp = jax.random.split(key)
    x = jax.random.normal(kx, (B, L, D), jnp.float32)
    params = _make_params(kp, D, H, He, Z, K)

    # B=10 -> padded to 16, TB forced to 8 -> grid=(2,): exercises padding + multi-step.
    for trans_type in ("residual", "mul", "forward"):
        zs = seq_neutral_ad_forward(x, params, trans_type=trans_type)
        zs = jax.block_until_ready(zs)
        ref = seq_neutral_ad_reference(x, params, trans_type=trans_type)
        assert zs.shape == (B, K + 1, Z)
        assert jnp.allclose(zs, ref, atol=2e-2, rtol=2e-2), f"mismatch ({trans_type})"

    # Small-batch path: B < 8 -> single padded tile, grid=(1,).
    x_small = jax.random.normal(jax.random.PRNGKey(1), (4, L, D), jnp.float32)
    zs = jax.block_until_ready(
        seq_neutral_ad_forward(x_small, params, trans_type="residual"))
    ref = seq_neutral_ad_reference(x_small, params, trans_type="residual")
    assert zs.shape == (4, K + 1, Z)
    assert jnp.allclose(zs, ref, atol=2e-2, rtol=2e-2), "mismatch (small batch)"

    print("KERNEL_OK")
</pallas_src>

<mosaic_0001>
module attributes {stable_mosaic.version = 11 : i64} {
  func.func @_seq_ntl_kernel(%arg0: i32, %arg1: memref<64x16xbf16, #tpu.memory_space<vmem>>, %arg2: memref<16x160xbf16, #tpu.memory_space<vmem>>, %arg3: memref<1x160xf32, #tpu.memory_space<vmem>>, %arg4: memref<160x160xbf16, #tpu.memory_space<vmem>>, %arg5: memref<1x160xf32, #tpu.memory_space<vmem>>, %arg6: memref<160x80xf32, #tpu.memory_space<vmem>>, %arg7: memref<1x80xf32, #tpu.memory_space<vmem>>, %arg8: memref<8x80xf32, #tpu.memory_space<vmem>>) attributes {dimension_semantics = [#tpu.dimension_semantics<parallel>], iteration_bounds = array<i64: 2>, scalar_prefetch = 0 : i64, scratch_operands = 0 : i64, tpu.core_type = #tpu.core_type<tc>, window_params = [{transform_indices = @transform_0, window_bounds = array<i64: 64, 16>}, {pipeline_mode = #tpu.pipeline_mode<synchronous>, transform_indices = @transform_1, window_bounds = array<i64: 16, 160>}, {pipeline_mode = #tpu.pipeline_mode<synchronous>, transform_indices = @transform_2, window_bounds = array<i64: 1, 160>}, {pipeline_mode = #tpu.pipeline_mode<synchronous>, transform_indices = @transform_3, window_bounds = array<i64: 160, 160>}, {pipeline_mode = #tpu.pipeline_mode<synchronous>, transform_indices = @transform_4, window_bounds = array<i64: 1, 160>}, {pipeline_mode = #tpu.pipeline_mode<synchronous>, transform_indices = @transform_5, window_bounds = array<i64: 160, 80>}, {pipeline_mode = #tpu.pipeline_mode<synchronous>, transform_indices = @transform_6, window_bounds = array<i64: 1, 80>}, {transform_indices = @transform_7, window_bounds = array<i64: 8, 80>}]} {
    %c0 = arith.constant 0 : index
    %c0_0 = arith.constant 0 : index
    %0 = vector.load %arg1[%c0, %c0_0] : memref<64x16xbf16, #tpu.memory_space<vmem>>, vector<64x16xbf16>
    %c0_1 = arith.constant 0 : index
    %c0_2 = arith.constant 0 : index
    %1 = vector.load %arg2[%c0_1, %c0_2] : memref<16x160xbf16, #tpu.memory_space<vmem>>, vector<16x160xbf16>
    %cst = arith.constant dense<0.000000e+00> : vector<64x160xf32>
    %2 = tpu.matmul %0, %1, %cst {dimension_numbers = #tpu.dot_dimension_numbers<[1], [0], [0], [1], [0, 0, 1, 1], [], []>} : vector<64x16xbf16>, vector<16x160xbf16>, vector<64x160xf32> -> vector<64x160xf32>
    %c0_3 = arith.constant 0 : index
    %c0_4 = arith.constant 0 : index
    %3 = vector.load %arg3[%c0_3, %c0_4] : memref<1x160xf32, #tpu.memory_space<vmem>>, vector<1x160xf32>
    %4 = vector.broadcast %3 : vector<1x160xf32> to vector<64x160xf32>
    %5 = arith.addf %2, %4 : vector<64x160xf32>
    %6 = tpu.iota {dimensions = array<i32: 1>} : vector<64x160xi32>
    %c128_i32 = arith.constant 128 : i32
    %7 = vector.broadcast %c128_i32 : i32 to vector<64x160xi32>
    %8 = arith.cmpi slt, %6, %7 : vector<64x160xi32>
    %cst_5 = arith.constant 0.000000e+00 : f32
    %9 = vector.broadcast %cst_5 : f32 to vector<64x160xf32>
    %10 = arith.maximumf %5, %9 : vector<64x160xf32>
    %11 = arith.select %8, %10, %5 : vector<64x160xi1>, vector<64x160xf32>
    %12 = arith.truncf %11 : vector<64x160xf32> to vector<64x160xbf16>
    %c0_6 = arith.constant 0 : index
    %c0_7 = arith.constant 0 : index
    %13 = vector.load %arg4[%c0_6, %c0_7] : memref<160x160xbf16, #tpu.memory_space<vmem>>, vector<160x160xbf16>
    %cst_8 = arith.constant dense<0.000000e+00> : vector<64x160xf32>
    %14 = tpu.matmul %12, %13, %cst_8 {dimension_numbers = #tpu.dot_dimension_numbers<[1], [0], [0], [1], [0, 0, 1, 1], [], []>} : vector<64x160xbf16>, vector<160x160xbf16>, vector<64x160xf32> -> vector<64x160xf32>
    %c0_9 = arith.constant 0 : index
    %c0_10 = arith.constant 0 : index
    %15 = vector.load %arg5[%c0_9, %c0_10] : memref<1x160xf32, #tpu.memory_space<vmem>>, vector<1x160xf32>
    %16 = vector.broadcast %15 : vector<1x160xf32> to vector<64x160xf32>
    %17 = arith.addf %14, %16 : vector<64x160xf32>
    %cst_11 = arith.constant 0.000000e+00 : f32
    %18 = vector.broadcast %cst_11 : f32 to vector<64x160xf32>
    %19 = arith.maximumf %17, %18 : vector<64x160xf32>
    %20 = vector.shape_cast %19 : vector<64x160xf32> to vector<8x8x160xf32>
    %cst_12 = arith.constant dense<0.000000e+00> : vector<8x160xf32>
    %21 = vector.multi_reduction <add>, %20, %cst_12 [1] : vector<8x8x160xf32> to vector<8x160xf32>
    %c0_13 = arith.constant 0 : index
    %c0_14 = arith.constant 0 : index
    %22 = vector.load %arg6[%c0_13, %c0_14] : memref<160x80xf32, #tpu.memory_space<vmem>>, vector<160x80xf32>
    %cst_15 = arith.constant dense<0.000000e+00> : vector<8x80xf32>
    %23 = tpu.matmul %21, %22, %cst_15 {dimension_numbers = #tpu.dot_dimension_numbers<[1], [0], [0], [1], [0, 0, 1, 1], [], []>} : vector<8x160xf32>, vector<160x80xf32>, vector<8x80xf32> -> vector<8x80xf32>
    %c0_16 = arith.constant 0 : index
    %c0_17 = arith.constant 0 : index
    %24 = vector.load %arg7[%c0_16, %c0_17] : memref<1x80xf32, #tpu.memory_space<vmem>>, vector<1x80xf32>
    %25 = vector.broadcast %24 : vector<1x80xf32> to vector<8x80xf32>
    %26 = arith.addf %23, %25 : vector<8x80xf32>
    %c0_18 = arith.constant 0 : index
    %c0_19 = arith.constant 0 : index
    %27 = vector.load %arg8[%c0_18, %c0_19] : memref<8x80xf32, #tpu.memory_space<vmem>>, vector<8x80xf32>
    tpu.vector_store %arg8[%c0_18, %c0_19], %26 {strides = array<i32>} : memref<8x80xf32, #tpu.memory_space<vmem>>, vector<8x80xf32>,
    return
  }
  func.func @transform_0(%arg0: i32) -> (i32, i32) {
    %c0_i32 = arith.constant 0 : i32
    %c0_i32_0 = arith.constant 0 : i32
    return %arg0, %c0_i32 : i32, i32
  }
  func.func @transform_1(%arg0: i32) -> (i32, i32) {
    %c0_i32 = arith.constant 0 : i32
    %c0_i32_0 = arith.constant 0 : i32
    %c0_i32_1 = arith.constant 0 : i32
    return %c0_i32, %c0_i32_0 : i32, i32
  }
  func.func @transform_2(%arg0: i32) -> (i32, i32) {
    %c0_i32 = arith.constant 0 : i32
    %c0_i32_0 = arith.constant 0 : i32
    %c0_i32_1 = arith.constant 0 : i32
    return %c0_i32, %c0_i32_0 : i32, i32
  }
  func.func @transform_3(%arg0: i32) -> (i32, i32) {
    %c0_i32 = arith.constant 0 : i32
    %c0_i32_0 = arith.constant 0 : i32
    %c0_i32_1 = arith.constant 0 : i32
    return %c0_i32, %c0_i32_0 : i32, i32
  }
  func.func @transform_4(%arg0: i32) -> (i32, i32) {
    %c0_i32 = arith.constant 0 : i32
    %c0_i32_0 = arith.constant 0 : i32
    %c0_i32_1 = arith.constant 0 : i32
    return %c0_i32, %c0_i32_0 : i32, i32
  }
  func.func @transform_5(%arg0: i32) -> (i32, i32) {
    %c0_i32 = arith.constant 0 : i32
    %c0_i32_0 = arith.constant 0 : i32
    %c0_i32_1 = arith.constant 0 : i32
    return %c0_i32, %c0_i32_0 : i32, i32
  }
  func.func @transform_6(%arg0: i32) -> (i32, i32) {
    %c0_i32 = arith.constant 0 : i32
    %c0_i32_0 = arith.constant 0 : i32
    %c0_i32_1 = arith.constant 0 : i32
    return %c0_i32, %c0_i32_0 : i32, i32
  }
  func.func @transform_7(%arg0: i32) -> (i32, i32) {
    %c0_i32 = arith.constant 0 : i32
    %c0_i32_0 = arith.constant 0 : i32
    return %arg0, %c0_i32 : i32, i32
  }
}

</mosaic_0001>

<llo_original>
// kernel: tpu_custom_call.1
$region0: #{tpu_custom_call.1}
  #allocation0 [shape = 'u32[]', space=smem, size = 0x4, offset = 0x4, fixed_abs, tag = 'smem constant byte address 0x4 - core index']
  #allocation1 [shape = 'u32[144,128]{1,0:T(1,128)}', space=vmem, size = 0x12000, scoped, tag = 'internal scratch']
  %s0 = inlined_call_operand.vmem [shape: bf16[128,16], index: 0, kind: input, shape index: {}]
  %s1 = inlined_call_operand.vmem [shape: bf16[16,160], index: 1, kind: input, shape index: {}]
  %s2 = inlined_call_operand.vmem [shape: f32[1,160], index: 2, kind: input, shape index: {}]
  %s3 = inlined_call_operand.hbm [shape: bf16[160,160], index: 3, kind: input, shape index: {}]
  %s4 = inlined_call_operand.vmem [shape: f32[1,160], index: 4, kind: input, shape index: {}]
  %s5 = inlined_call_operand.hbm [shape: f32[160,80], index: 5, kind: input, shape index: {}]
  %s6 = inlined_call_operand.vmem [shape: f32[1,80], index: 6, kind: input, shape index: {}]
  %s7 = inlined_call_operand.hbm [shape: f32[16,80], index: 7, kind: output, shape index: {}]
  %s8 = sld [smem:[#allocation0]]
  $region69: #{tpu_custom_call.1} parent=0
    _
  %s10 = ssub.s32 1, %s8
  %s11 = scalar_select 0, %s10, %s8
  $region1: #{tpu_custom_call.1} parent=0
    #allocation2 [shape = 'u8[81920]{0}', space=vmem, size = 0x14000, scoped, tag = 'input window, operand 3, single buffered']
    #allocation3 [shape = 's32[2]{0}', space=sflag, size = 0x8, scoped, tag = 'scoped memory for tpu_custom_call.1']
    #allocation4 [shape = 's32[2]{0}', space=sflag, size = 0x8, scoped, tag = 'scoped memory for tpu_custom_call.1']
    #allocation5 [shape = 'u8[81920]{0}', space=vmem, size = 0x14000, scoped, tag = 'input window, operand 5, single buffered']
    #allocation6 [shape = 's32[1]{0}', space=sflag, size = 0x4, scoped, tag = 'scoped memory for tpu_custom_call.1']
    #allocation7 [shape = 'u8[8192]{0}', space=vmem, size = 0x2000, scoped, tag = 'output window, operand 0']
    %12 = vsyncpa [#allocation3], 0
    %13 = vsyncpa [#allocation6], 0
    %14 = vsyncpa [#allocation4], 0
    %s15 = scalar_lea.sflag [#allocation4], 1
    %16 = vsyncpa %s15, 0
    loop: start=0, step=1, limit=4
    $region2: #{tpu_custom_call.1} parent=1 // loop_pre_header
      _
    $region3: #{tpu_custom_call.1} parent=1 // loop_header
      %s18 = sphi 0, %s22
      %p19 = scmp.ge.s32.totalorder %s18, 4
      %s28 = sphi 0, %s30
      %s31 = sphi 0, %s28
      %s32 = sphi 0, %s31
      %s48 = sphi 0, %s32
      %s52 = sphi 0, %s52
      %s54 = sphi 0, %s52
      %s55 = sphi 0, %s54
      %s69 = sphi 0, %s55
      %s73 = sphi 0, %s73
      %s75 = sphi 0, %s73
      %s76 = sphi 0, %s75
      %s90 = sphi 0, %s76
      %s94 = sphi 0, %s94
      %s96 = sphi 0, %s94
      %s97 = sphi 0, %s96
      %s111 = sphi 0, %s97
      %s115 = sphi 0, %s115
      %s117 = sphi 0, %s115
      %s118 = sphi 0, %s117
      %s132 = sphi 0, %s118
      %s136 = sphi 0, %s136
      %s138 = sphi 0, %s136
      %s139 = sphi 0, %s138
      %s153 = sphi 0, %s139
      %s157 = sphi 0, %s157
      %s159 = sphi 0, %s157
      %s160 = sphi 0, %s159
      %s174 = sphi 0, %s160
      %s180 = sphi 0, %s182
      %s183 = sphi 0, %s180
      %s184 = sphi 0, %s183
      %s200 = sphi 0, %s184
    $region4: #{tpu_custom_call.1} parent=1 // loop_header_branch
      %21 = sbr.rel (%p19) target = $region8
    $region5: #{tpu_custom_call.1} parent=1 // loop_body
      %s23 = ssub.s32 %s18, 1
      %s24 = ssub.s32 %s18, 2
      %s25 = sadd.s32 %s18, 1
      %s26 = ssub.s32 %s18, %s25
      %p27 = scmp.eq.s32.totalorder %s26, 0
      %s29 = sadd.s32 %s28, 1
      %s30 = scalar_select %p27, %s28, %s29
      %p33 = pneg %p27
      %p34 = scmp.eq.s32.totalorder %s18, 1
      %p35 = por %p33, %p34
      %p36 = scmp.ne.s32.totalorder %s28, %s31
      %p37 = scmp.eq.s32.totalorder %s18, 0
      %p38 = por %p36, %p37
      %p39 = scmp.ne.s32.totalorder %s28, %s31
      %p40 = scmp.eq.s32.totalorder %s23, 1
      %p41 = por %p39, %p40
      %p42 = scmp.ne.s32.totalorder %s31, %s32
      %p43 = scmp.eq.s32.totalorder %s23, 0
      %p44 = por %p42, %p43
      %p45 = scmp.ne.s32.totalorder %s31, %s32
      %p46 = scmp.eq.s32.totalorder %s24, 1
      %p47 = por %p45, %p46
      %p49 = scmp.ne.s32.totalorder %s32, %s48
      %p50 = scmp.eq.s32.totalorder %s24, 0
      %p51 = por %p49, %p50
      %s53 = sadd.s32 %s52, 1
      %p56 = scmp.eq.s32.totalorder %s18, 1
      %p57 = scmp.ne.s32.totalorder %s52, %s54
      %p58 = scmp.eq.s32.totalorder %s18, 0
      %p59 = por %p57, %p58
      %p60 = scmp.ne.s32.totalorder %s52, %s54
      %p61 = scmp.eq.s32.totalorder %s23, 1
      %p62 = por %p60, %p61
      %p63 = scmp.ne.s32.totalorder %s54, %s55
      %p64 = scmp.eq.s32.totalorder %s23, 0
      %p65 = por %p63, %p64
      %p66 = scmp.ne.s32.totalorder %s54, %s55
      %p67 = scmp.eq.s32.totalorder %s24, 1
      %p68 = por %p66, %p67
      %p70 = scmp.ne.s32.totalorder %s55, %s69
      %p71 = scmp.eq.s32.totalorder %s24, 0
      %p72 = por %p70, %p71
      %s74 = sadd.s32 %s73, 1
      %p77 = scmp.eq.s32.totalorder %s18, 1
      %p78 = scmp.ne.s32.totalorder %s73, %s75
      %p79 = scmp.eq.s32.totalorder %s18, 0
      %p80 = por %p78, %p79
      %p81 = scmp.ne.s32.totalorder %s73, %s75
      %p82 = scmp.eq.s32.totalorder %s23, 1
      %p83 = por %p81, %p82
      %p84 = scmp.ne.s32.totalorder %s75, %s76
      %p85 = scmp.eq.s32.totalorder %s23, 0
      %p86 = por %p84, %p85
      %p87 = scmp.ne.s32.totalorder %s75, %s76
      %p88 = scmp.eq.s32.totalorder %s24, 1
      %p89 = por %p87, %p88
      %p91 = scmp.ne.s32.totalorder %s76, %s90
      %p92 = scmp.eq.s32.totalorder %s24, 0
      %p93 = por %p91, %p92
      %s95 = sadd.s32 %s94, 1
      %p98 = scmp.eq.s32.totalorder %s18, 1
      %p99 = scmp.ne.s32.totalorder %s94, %s96
      %p100 = scmp.eq.s32.totalorder %s18, 0
      %p101 = por %p99, %p100
      %p102 = scmp.ne.s32.totalorder %s94, %s96
      %p103 = scmp.eq.s32.totalorder %s23, 1
      %p104 = por %p102, %p103
      %p105 = scmp.ne.s32.totalorder %s96, %s97
      %p106 = scmp.eq.s32.totalorder %s23, 0
      %p107 = por %p105, %p106
      %p108 = scmp.ne.s32.totalorder %s96, %s97
      %p109 = scmp.eq.s32.totalorder %s24, 1
      %p110 = por %p108, %p109
      %p112 = scmp.ne.s32.totalorder %s97, %s111
      %p113 = scmp.eq.s32.totalorder %s24, 0
      %p114 = por %p112, %p113
      %s116 = sadd.s32 %s115, 1
      %p119 = scmp.eq.s32.totalorder %s18, 1
      %p120 = scmp.ne.s32.totalorder %s115, %s117
      %p121 = scmp.eq.s32.totalorder %s18, 0
      %p122 = por %p120, %p121
      %p123 = scmp.ne.s32.totalorder %s115, %s117
      %p124 = scmp.eq.s32.totalorder %s23, 1
      %p125 = por %p123, %p124
      %p126 = scmp.ne.s32.totalorder %s117, %s118
      %p127 = scmp.eq.s32.totalorder %s23, 0
      %p128 = por %p126, %p127
      %p129 = scmp.ne.s32.totalorder %s117, %s118
      %p130 = scmp.eq.s32.totalorder %s24, 1
      %p131 = por %p129, %p130
      %p133 = scmp.ne.s32.totalorder %s118, %s132
      %p134 = scmp.eq.s32.totalorder %s24, 0
      %p135 = por %p133, %p134
      %s137 = sadd.s32 %s136, 1
      %p140 = scmp.eq.s32.totalorder %s18, 1
      %p141 = scmp.ne.s32.totalorder %s136, %s138
      %p142 = scmp.eq.s32.totalorder %s18, 0
      %p143 = por %p141, %p142
      %p144 = scmp.ne.s32.totalorder %s136, %s138
      %p145 = scmp.eq.s32.totalorder %s23, 1
      %p146 = por %p144, %p145
      %p147 = scmp.ne.s32.totalorder %s138, %s139
      %p148 = scmp.eq.s32.totalorder %s23, 0
      %p149 = por %p147, %p148
      %p150 = scmp.ne.s32.totalorder %s138, %s139
      %p151 = scmp.eq.s32.totalorder %s24, 1
      %p152 = por %p150, %p151
      %p154 = scmp.ne.s32.totalorder %s139, %s153
      %p155 = scmp.eq.s32.totalorder %s24, 0
      %p156 = por %p154, %p155
      %s158 = sadd.s32 %s157, 1
      %p161 = scmp.eq.s32.totalorder %s18, 1
      %p162 = scmp.ne.s32.totalorder %s157, %s159
      %p163 = scmp.eq.s32.totalorder %s18, 0
      %p164 = por %p162, %p163
      %p165 = scmp.ne.s32.totalorder %s157, %s159
      %p166 = scmp.eq.s32.totalorder %s23, 1
      %p167 = por %p165, %p166
      %p168 = scmp.ne.s32.totalorder %s159, %s160
      %p169 = scmp.eq.s32.totalorder %s23, 0
      %p170 = por %p168, %p169
      %p171 = scmp.ne.s32.totalorder %s159, %s160
      %p172 = scmp.eq.s32.totalorder %s24, 1
      %p173 = por %p171, %p172
      %p175 = scmp.ne.s32.totalorder %s160, %s174
      %p176 = scmp.eq.s32.totalorder %s24, 0
      %p177 = por %p175, %p176
      %s178 = ssub.s32 %s18, %s25
      %p179 = scmp.eq.s32.totalorder %s178, 0
      %s181 = sadd.s32 %s180, 1
      %s182 = scalar_select %p179, %s180, %s181
      %p185 = pneg %p179
      %p186 = scmp.eq.s32.totalorder %s18, 1
      %p187 = por %p185, %p186
      %p188 = scmp.ne.s32.totalorder %s180, %s183
      %p189 = scmp.eq.s32.totalorder %s18, 0
      %p190 = por %p188, %p189
      %p191 = scmp.ne.s32.totalorder %s180, %s183
      %p192 = scmp.eq.s32.totalorder %s23, 1
      %p193 = por %p191, %p192
      %p194 = scmp.ne.s32.totalorder %s183, %s184
      %p195 = scmp.eq.s32.totalorder %s23, 0
      %p196 = por %p194, %p195
      %p197 = scmp.ne.s32.totalorder %s183, %s184
      %p198 = scmp.eq.s32.totalorder %s24, 1
      %p199 = por %p197, %p198
      %p201 = scmp.ne.s32.totalorder %s184, %s200
      %p202 = scmp.eq.s32.totalorder %s24, 0
      %p203 = por %p201, %p202
      %p204 = scmp.le.s32.totalorder 1, %s18
      %p205 = scmp.lt.s32.totalorder %s18, 3
      %p206 = pnand %p204, %p205
      %p207 = pneg %p206
      // Predicated region
      $region9: #{tpu_custom_call.1} parent=5 // pred_check
        _
      $region10: #{tpu_custom_call.1} parent=5 // pred_check_branch
        %209 = sbr.rel (%p206) target = $region12
      $region11: #{tpu_custom_call.1} parent=5 // pred_region
        %s210 = ssub.s32 %s18, 1
        // Predicated region
        $region13: #{tpu_custom_call.1} parent=11 // pred_check
          %p211 = pneg %p65
        $region14: #{tpu_custom_call.1} parent=11 // pred_check_branch
          %213 = sbr.rel (%p211) target = $region16
        $region15: #{tpu_custom_call.1} parent=11 // pred_region
          _
        $region16: #{tpu_custom_call.1} parent=11 // pred_fallthru
          _
        // Predicated region
        $region17: #{tpu_custom_call.1} parent=11 // pred_check
          %p214 = pneg %p86
        $region18: #{tpu_custom_call.1} parent=11 // pred_check_branch
          %216 = sbr.rel (%p214) target = $region20
        $region19: #{tpu_custom_call.1} parent=11 // pred_region
          _
        $region20: #{tpu_custom_call.1} parent=11 // pred_fallthru
          _
        // Predicated region
        $region21: #{tpu_custom_call.1} parent=11 // pred_check
          %p217 = pneg %p107
        $region22: #{tpu_custom_call.1} parent=11 // pred_check_branch
          %219 = sbr.rel (%p217) target = $region24
        $region23: #{tpu_custom_call.1} parent=11 // pred_region
          %s221 = ssub.s32 2560, 2560
          %222 = vsyncadd [#allocation3], %s221
          %s223 = sshll.u32 [#allocation2], 4
          %s224 = int_to_ptr.vmem [resolvable:$true] %s223
          %229 = dma.hbm_to_vmem [thread:$0]  %s3, 2560, %s224, [#allocation3], 128, 128, 8
        $region24: #{tpu_custom_call.1} parent=11 // pred_fallthru
          _
        // Predicated region
        $region25: #{tpu_custom_call.1} parent=11 // pred_check
          %p230 = pneg %p128
        $region26: #{tpu_custom_call.1} parent=11 // pred_check_branch
          %232 = sbr.rel (%p230) target = $region28
        $region27: #{tpu_custom_call.1} parent=11 // pred_region
          _
        $region28: #{tpu_custom_call.1} parent=11 // pred_fallthru
          _
        // Predicated region
        $region29: #{tpu_custom_call.1} parent=11 // pred_check
          %p233 = pneg %p149
        $region30: #{tpu_custom_call.1} parent=11 // pred_check_branch
          %235 = sbr.rel (%p233) target = $region32
        $region31: #{tpu_custom_call.1} parent=11 // pred_region
          %s237 = ssub.s32 2560, 2560
          %238 = vsyncadd [#allocation6], %s237
          %s239 = sshll.u32 [#allocation5], 4
          %s240 = int_to_ptr.vmem [resolvable:$true] %s239
          %245 = dma.hbm_to_vmem [thread:$0]  %s5, 2560, %s240, [#allocation6], 128, 128, 8
        $region32: #{tpu_custom_call.1} parent=11 // pred_fallthru
          _
        // Predicated region
        $region33: #{tpu_custom_call.1} parent=11 // pred_check
          %p246 = pneg %p170
        $region34: #{tpu_custom_call.1} parent=11 // pred_check_branch
          %248 = sbr.rel (%p246) target = $region36
        $region35: #{tpu_custom_call.1} parent=11 // pred_region
          _
        $region36: #{tpu_custom_call.1} parent=11 // pred_fallthru
          _
      $region12: #{tpu_custom_call.1} parent=5 // pred_fallthru
        _
      %p249 = scmp.lt.s32.totalorder %s18, 2
      // Predicated region
      $region37: #{tpu_custom_call.1} parent=5 // pred_check
        %p250 = pneg %p249
      $region38: #{tpu_custom_call.1} parent=5 // pred_check_branch
        %252 = sbr.rel (%p250) target = $region40
      $region39: #{tpu_custom_call.1} parent=5 // pred_region
        // Predicated region
        $region41: #{tpu_custom_call.1} parent=39 // pred_check
          %p253 = pneg %p38
        $region42: #{tpu_custom_call.1} parent=39 // pred_check_branch
          %255 = sbr.rel (%p253) target = $region44
        $region43: #{tpu_custom_call.1} parent=39 // pred_region
          %s256 = smul.u32 8, %s18
          %p257 = scmp.lt.s32.totalorder %s256, 15
          %s258 = scalar_select %p257, %s256, 15
          %s259 = smul.addr %s258, 4
          %s260 = scalar_lea.vmem %s0, %s259
          %s261 = smul.u32 8, %s18
        $region44: #{tpu_custom_call.1} parent=39 // pred_fallthru
          _
      $region40: #{tpu_custom_call.1} parent=5 // pred_fallthru
        _
      %p262 = scmp.le.s32.totalorder 1, %s18
      %p263 = scmp.lt.s32.totalorder %s18, 3
      %p264 = pnand %p262, %p263
      %p265 = pneg %p264
      // Predicated region
      $region45: #{tpu_custom_call.1} parent=5 // pred_check
        _
      $region46: #{tpu_custom_call.1} parent=5 // pred_check_branch
        %267 = sbr.rel (%p264) target = $region48
      $region47: #{tpu_custom_call.1} parent=5 // pred_region
        %s268 = ssub.s32 %s18, 1
        // Predicated region
        $region49: #{tpu_custom_call.1} parent=47 // pred_check
          %p269 = pneg %p107
        $region50: #{tpu_custom_call.1} parent=47 // pred_check_branch
          %271 = sbr.rel (%p269) target = $region52
        $region51: #{tpu_custom_call.1} parent=47 // pred_region
          %272 = dma.done [#allocation3], 2560
        $region52: #{tpu_custom_call.1} parent=47 // pred_fallthru
          _
        // Predicated region
        $region53: #{tpu_custom_call.1} parent=47 // pred_check
          %p273 = pneg %p149
        $region54: #{tpu_custom_call.1} parent=47 // pred_check_branch
          %275 = sbr.rel (%p273) target = $region56
        $region55: #{tpu_custom_call.1} parent=47 // pred_region
          %276 = dma.done [#allocation6], 2560
        $region56: #{tpu_custom_call.1} parent=47 // pred_fallthru
          _
        %s277 = smul.u32 8, %s23
        %p278 = scmp.lt.s32.totalorder %s277, 15
        %s279 = scalar_select %p278, %s277, 15
        %s280 = smul.addr %s279, 4
        %s281 = scalar_lea.vmem %s0, %s280
        %p282 = pneg %p44
        %p283 = pneg %p41
        %p284 = pneg %p65
        %p285 = pneg %p62
        %p286 = pneg %p86
        %p287 = pneg %p83
        %p288 = pneg %p107
        %p289 = pneg %p104
        %p290 = pneg %p128
        %p291 = pneg %p125
        %p292 = pneg %p149
        %p293 = pneg %p146
        %p294 = pneg %p170
        %p295 = pneg %p167
        %p296 = pneg %p196
        %p297 = pneg %p193
        %s298 = sand.u32 %s183, 1
        %s299 = scalar_lea.sflag [#allocation4], %s298
        %s300 = sand.u32 %s183, 1
        %s301 = smul.addr %s300, 8
        %s302 = scalar_lea.vmem [#allocation7], %s301
        %s303 = smul.u32 8, %s23
        %p304 = scmp.lt.s32.totalorder %s303, 15
        %s305 = scalar_select %p304, %s303, 15
        %s306 = smul.addr %s305, 4
        %s307 = scalar_lea.vmem %s0, %s306
        %s308 = smul.u32 8, %s23
        %v310 = vld [vmem:[%s307] sm:$0xf]
        %v311 = vld [vmem:[%s307 + $0x4] sm:$0xf]
        %v312 = vld [vmem:[%s307 + $0x8] sm:$0xf]
        %v313 = vld [vmem:[%s307 + $0xc] sm:$0xf]
        %v314 = vld [vmem:[%s307 + $0x10] sm:$0xf]
        %v315 = vld [vmem:[%s307 + $0x14] sm:$0xf]
        %v316 = vld [vmem:[%s307 + $0x18] sm:$0xf]
        %v317 = vld [vmem:[%s307 + $0x1c] sm:$0xf]
        %v318 = vld [vmem:[%s1] sm:$0xff]
        %v319 = vld [vmem:[%s1 + $0x8] sm:$0xff]
        %v320 = vld [vmem:[%s2] sm:$0x3]
        %v322 = vlaneseq
        %v323 = vshrl.u32 %v322, 7
        %v324 = vsub.s32 0, %v323
        %v325 = vrot.slane %v320, %v324
        %v326 = vlaneseq
        %v327 = vshrl.u32 %v326, 7
        %v328 = vsub.s32 1, %v327
        %v329 = vrot.slane %v320, %v328
        %v340 = vunpack.c.l.b16 %v310
        %v341 = vunpack.c.l.b16 %v311
        %v342 = vunpack.c.l.b16 %v312
        %v343 = vunpack.c.l.b16 %v313
        %v344 = vunpack.c.l.b16 %v314
        %v345 = vunpack.c.l.b16 %v315
        %v346 = vunpack.c.l.b16 %v316
        %v347 = vunpack.c.l.b16 %v317
        %v348 = vpack.c.b16 %v341, %v340
        %v349 = vpack.c.b16 %v343, %v342
        %v350 = vpack.c.b16 %v345, %v344
        %v351 = vpack.c.b16 %v347, %v346
        %v354 = vunpack.c.l.b16 %v318
        %v355 = vunpack.c.h.b16 %v318
        %v356 = vunpack.c.l.b16 %v319
        %v357 = vunpack.c.h.b16 %v319
        %v358 = vpack.c.b16 %v356, %v354
        %v359 = vpack.c.b16 %v357, %v355
        %vm362 = vcmask 130048
        %v364 = vsel %vm362, %v348, 0
        %v367 = vsel %vm362, %v349, 0
        %v370 = vsel %vm362, %v350, 0
        %v373 = vsel %vm362, %v351, 0
        %375 = vmatprep.subr.bf16.mxu0 %v359
        %376 = vmatpush1.bf16.msra.mxu0 %v358
        %377 = vmatprep.subr.bf16.mxu0 0
        %378 = vmatpush1.bf16.msra.mxu0 0
        %379 = vmatprep.subr.bf16.mxu0 0
        %380 = vmatpush1.bf16.msra.mxu0 0
        %381 = vmatprep.subr.bf16.mxu0 0
        %382 = vmatpush1.bf16.msra.mxu0 0
        %383 = vmatprep.subr.bf16.mxu0 0
        %384 = vmatpush1.bf16.msra.mxu0 0
        %385 = vmatprep.subr.bf16.mxu0 0
        %386 = vmatpush1.bf16.msra.mxu0 0
        %387 = vmatprep.subr.bf16.mxu0 0
        %388 = vmatpush1.bf16.msra.mxu0 0
        %389 = vmatprep.subr.bf16.mxu0 0
        %390 = vmatpush1.bf16.msra.mxu0 0
        %391 = vmatprep.subr.bf16.mxu0 0
        %392 = vmatpush1.bf16.msra.mxu0 0
        %393 = vmatprep.subr.bf16.mxu0 0
        %394 = vmatpush1.bf16.msra.mxu0 0
        %395 = vmatprep.subr.bf16.mxu0 0
        %396 = vmatpush1.bf16.msra.mxu0 0
        %397 = vmatprep.subr.bf16.mxu0 0
        %398 = vmatpush1.bf16.msra.mxu0 0
        %399 = vmatprep.subr.bf16.mxu0 0
        %400 = vmatpush1.bf16.msra.mxu0 0
        %401 = vmatprep.subr.bf16.mxu0 0
        %402 = vmatpush1.bf16.msra.mxu0 0
        %403 = vmatprep.subr.bf16.mxu0 0
        %404 = vmatpush1.bf16.msra.mxu0 0
        %405 = vmatprep.subr.bf16.mxu0 0
        %406 = vmatpush1.bf16.msra.mxu0 0
        %407 = vmatprep.mubr.bf16.mxu0 0
        %408 = vmatmul.mubr.bf16.gmra.mrb[0].mxu0 %v364
        %v409 = vpop.f32.mrb[0].mxu0
        %v410 = vadd.f32 %v325, %v409
        %v411 = vpop.f32.mrb[0].mxu0
        %v412 = vadd.f32 %v329, %v411
        %v413 = vpop.f32.mrb[0].mxu0
        %v414 = vadd.f32 %v325, %v413
        %v415 = vpop.f32.mrb[0].mxu0
        %v416 = vadd.f32 %v329, %v415
        %417 = vmatprep.mubr.bf16.mxu0 0
        %418 = vmatmul.mubr.bf16.gmra.mrb[0].mxu0 %v367
        %v419 = vpop.f32.mrb[0].mxu0
        %v420 = vadd.f32 %v325, %v419
        %v421 = vpop.f32.mrb[0].mxu0
        %v422 = vadd.f32 %v329, %v421
        %v423 = vpop.f32.mrb[0].mxu0
        %v424 = vadd.f32 %v325, %v423
        %v425 = vpop.f32.mrb[0].mxu0
        %v426 = vadd.f32 %v329, %v425
        %427 = vmatprep.mubr.bf16.mxu0 0
        %428 = vmatmul.mubr.bf16.gmra.mrb[0].mxu0 %v370
        %v429 = vpop.f32.mrb[0].mxu0
        %v430 = vadd.f32 %v325, %v429
        %v431 = vpop.f32.mrb[0].mxu0
        %v432 = vadd.f32 %v329, %v431
        %v433 = vpop.f32.mrb[0].mxu0
        %v434 = vadd.f32 %v325, %v433
        %v435 = vpop.f32.mrb[0].mxu0
        %v436 = vadd.f32 %v329, %v435
        %437 = vmatprep.mubr.bf16.mxu0 0
        %438 = vmatmul.mubr.bf16.gmra.mrb[0].mxu0 %v373
        %v439 = vpop.f32.mrb[0].mxu0
        %v440 = vadd.f32 %v325, %v439
        %v441 = vpop.f32.mrb[0].mxu0
        %v442 = vadd.f32 %v329, %v441
        %v443 = vpop.f32.mrb[0].mxu0
        %v444 = vadd.f32 %v325, %v443
        %v445 = vpop.f32.mrb[0].mxu0
        %v446 = vadd.f32 %v329, %v445
        %447 = vdwg.mxu0
        %v448 = vlaneseq
        %v449 = vand.u32 %v448, 127
        %v450 = vadd.s32 %v449, 128
        %vm451 = vcmp.lt.s32.totalorder %v449, 128
        %vm452 = vcmp.lt.s32.totalorder %v450, 128
        %v453 = vmax.f32 %v410, 0.0
        %v454 = vmax.f32 %v412, 0.0
        %v455 = vmax.f32 %v414, 0.0
        %v456 = vmax.f32 %v416, 0.0
        %v457 = vmax.f32 %v420, 0.0
        %v458 = vmax.f32 %v422, 0.0
        %v459 = vmax.f32 %v424, 0.0
        %v460 = vmax.f32 %v426, 0.0
        %v461 = vmax.f32 %v430, 0.0
        %v462 = vmax.f32 %v432, 0.0
        %v463 = vmax.f32 %v434, 0.0
        %v464 = vmax.f32 %v436, 0.0
        %v465 = vmax.f32 %v440, 0.0
        %v466 = vmax.f32 %v442, 0.0
        %v467 = vmax.f32 %v444, 0.0
        %v468 = vmax.f32 %v446, 0.0
        %v469 = vsel %vm451, %v453, %v410
        %v470 = vsel %vm452, %v454, %v412
        %v471 = vsel %vm451, %v455, %v414
        %v472 = vsel %vm452, %v456, %v416
        %v473 = vsel %vm451, %v457, %v420
        %v474 = vsel %vm452, %v458, %v422
        %v475 = vsel %vm451, %v459, %v424
        %v476 = vsel %vm452, %v460, %v426
        %v477 = vsel %vm451, %v461, %v430
        %v478 = vsel %vm452, %v462, %v432
        %v479 = vsel %vm451, %v463, %v434
        %v480 = vsel %vm452, %v464, %v436
        %v481 = vsel %vm451, %v465, %v440
        %v482 = vsel %vm452, %v466, %v442
        %v483 = vsel %vm451, %v467, %v444
        %v484 = vsel %vm452, %v468, %v446
        %v485 = vpack.c.bf16 %v471, %v469
        %v486 = vpack.c.bf16 %v472, %v470
        %v487 = vpack.c.bf16 %v475, %v473
        %v488 = vpack.c.bf16 %v476, %v474
        %v489 = vpack.c.bf16 %v479, %v477
        %v490 = vpack.c.bf16 %v480, %v478
        %v491 = vpack.c.bf16 %v483, %v481
        %v492 = vpack.c.bf16 %v484, %v482
        %v493 = vld [vmem:[#allocation2] sm:$0xff]
        %v494 = vld [vmem:[#allocation2 + $0x8] sm:$0xff]
        %v495 = vld [vmem:[#allocation2 + $0x10] sm:$0xff]
        %v496 = vld [vmem:[#allocation2 + $0x18] sm:$0xff]
        %v497 = vld [vmem:[#allocation2 + $0x20] sm:$0xff]
        %v498 = vld [vmem:[#allocation2 + $0x28] sm:$0xff]
        %v499 = vld [vmem:[#allocation2 + $0x30] sm:$0xff]
        %v500 = vld [vmem:[#allocation2 + $0x38] sm:$0xff]
        %v501 = vld [vmem:[#allocation2 + $0x40] sm:$0xff]
        %v502 = vld [vmem:[#allocation2 + $0x48] sm:$0xff]
        %v503 = vld [vmem:[#allocation2 + $0x50] sm:$0xff]
        %v504 = vld [vmem:[#allocation2 + $0x58] sm:$0xff]
        %v505 = vld [vmem:[#allocation2 + $0x60] sm:$0xff]
        %v506 = vld [vmem:[#allocation2 + $0x68] sm:$0xff]
        %v507 = vld [vmem:[#allocation2 + $0x70] sm:$0xff]
        %v508 = vld [vmem:[#allocation2 + $0x78] sm:$0xff]
        %v509 = vld [vmem:[#allocation2 + $0x80] sm:$0xff]
        %v510 = vld [vmem:[#allocation2 + $0x88] sm:$0xff]
        %v511 = vld [vmem:[#allocation2 + $0x90] sm:$0xff]
        %v512 = vld [vmem:[#allocation2 + $0x98] sm:$0xff]
        %v513 = vld [vmem:[%s4] sm:$0x3]
        %v515 = vlaneseq
        %v516 = vshrl.u32 %v515, 7
        %v517 = vsub.s32 0, %v516
        %v518 = vrot.slane %v513, %v517
        %v519 = vlaneseq
        %v520 = vshrl.u32 %v519, 7
        %v521 = vsub.s32 1, %v520
        %v522 = vrot.slane %v513, %v521
        %v545 = vunpack.c.l.b16 %v493
        %v546 = vunpack.c.h.b16 %v493
        %v547 = vunpack.c.l.b16 %v494
        %v548 = vunpack.c.h.b16 %v494
        %v549 = vunpack.c.l.b16 %v495
        %v550 = vunpack.c.h.b16 %v495
        %v551 = vunpack.c.l.b16 %v496
        %v552 = vunpack.c.h.b16 %v496
        %v553 = vunpack.c.l.b16 %v497
        %v554 = vunpack.c.h.b16 %v497
        %v555 = vunpack.c.l.b16 %v498
        %v556 = vunpack.c.h.b16 %v498
        %v557 = vunpack.c.l.b16 %v499
        %v558 = vunpack.c.h.b16 %v499
        %v559 = vunpack.c.l.b16 %v500
        %v560 = vunpack.c.h.b16 %v500
        %v561 = vunpack.c.l.b16 %v501
        %v562 = vunpack.c.h.b16 %v501
        %v563 = vunpack.c.l.b16 %v502
        %v564 = vunpack.c.h.b16 %v502
        %v565 = vunpack.c.l.b16 %v503
        %v566 = vunpack.c.h.b16 %v503
        %v567 = vunpack.c.l.b16 %v504
        %v568 = vunpack.c.h.b16 %v504
        %v569 = vunpack.c.l.b16 %v505
        %v570 = vunpack.c.h.b16 %v505
        %v571 = vunpack.c.l.b16 %v506
        %v572 = vunpack.c.h.b16 %v506
        %v573 = vunpack.c.l.b16 %v507
        %v574 = vunpack.c.h.b16 %v507
        %v575 = vunpack.c.l.b16 %v508
        %v576 = vunpack.c.h.b16 %v508
        %v577 = vunpack.c.l.b16 %v509
        %v578 = vunpack.c.h.b16 %v509
        %v579 = vunpack.c.l.b16 %v510
        %v580 = vunpack.c.h.b16 %v510
        %v581 = vunpack.c.l.b16 %v511
        %v582 = vunpack.c.h.b16 %v511
        %v583 = vunpack.c.l.b16 %v512
        %v584 = vunpack.c.h.b16 %v512
        %v585 = vpack.c.b16 %v547, %v545
        %v586 = vpack.c.b16 %v548, %v546
        %v587 = vpack.c.b16 %v551, %v549
        %v588 = vpack.c.b16 %v552, %v550
        %v589 = vpack.c.b16 %v555, %v553
        %v590 = vpack.c.b16 %v556, %v554
        %v591 = vpack.c.b16 %v559, %v557
        %v592 = vpack.c.b16 %v560, %v558
        %v593 = vpack.c.b16 %v563, %v561
        %v594 = vpack.c.b16 %v564, %v562
        %v595 = vpack.c.b16 %v567, %v565
        %v596 = vpack.c.b16 %v568, %v566
        %v597 = vpack.c.b16 %v571, %v569
        %v598 = vpack.c.b16 %v572, %v570
        %v599 = vpack.c.b16 %v575, %v573
        %v600 = vpack.c.b16 %v576, %v574
        %v601 = vpack.c.b16 %v579, %v577
        %v602 = vpack.c.b16 %v580, %v578
        %v603 = vpack.c.b16 %v583, %v581
        %v604 = vpack.c.b16 %v584, %v582
        %vm625 = vcmask 261120
        %v627 = vsel %vm625, %v486, 0
        %v630 = vsel %vm625, %v488, 0
        %v633 = vsel %vm625, %v490, 0
        %v636 = vsel %vm625, %v492, 0
        %638 = vmatprep.subr.bf16.mxu0 %v586
        %639 = vmatpush1.bf16.msra.mxu0 %v585
        %640 = vmatprep.subr.bf16.mxu0 %v588
        %641 = vmatpush1.bf16.msra.mxu0 %v587
        %642 = vmatprep.subr.bf16.mxu0 %v590
        %643 = vmatpush1.bf16.msra.mxu0 %v589
        %644 = vmatprep.subr.bf16.mxu0 %v592
        %645 = vmatpush1.bf16.msra.mxu0 %v591
        %646 = vmatprep.subr.bf16.mxu0 %v594
        %647 = vmatpush1.bf16.msra.mxu0 %v593
        %648 = vmatprep.subr.bf16.mxu0 %v596
        %649 = vmatpush1.bf16.msra.mxu0 %v595
        %650 = vmatprep.subr.bf16.mxu0 %v598
        %651 = vmatpush1.bf16.msra.mxu0 %v597
        %652 = vmatprep.subr.bf16.mxu0 %v600
        %653 = vmatpush1.bf16.msra.mxu0 %v599
        %654 = vmatprep.subr.bf16.mxu0 %v602
        %655 = vmatpush1.bf16.msra.mxu0 %v601
        %656 = vmatprep.subr.bf16.mxu0 %v604
        %657 = vmatpush1.bf16.msra.mxu0 %v603
        %658 = vmatprep.subr.bf16.mxu0 0
        %659 = vmatpush1.bf16.msra.mxu0 0
        %660 = vmatprep.subr.bf16.mxu0 0
        %661 = vmatpush1.bf16.msra.mxu0 0
        %662 = vmatprep.subr.bf16.mxu0 0
        %663 = vmatpush1.bf16.msra.mxu0 0
        %664 = vmatprep.subr.bf16.mxu0 0
        %665 = vmatpush1.bf16.msra.mxu0 0
        %666 = vmatprep.subr.bf16.mxu0 0
        %667 = vmatpush1.bf16.msra.mxu0 0
        %668 = vmatprep.subr.bf16.mxu0 0
        %669 = vmatpush1.bf16.msra.mxu0 0
        %670 = vmatprep.mubr.bf16.mxu0 %v627
        %671 = vmatmul.mubr.bf16.gmra.mrb[0].mxu0 %v485
        %v672 = vpop.f32.mrb[0].mxu0
        %v673 = vadd.f32 %v518, %v672
        %v674 = vpop.f32.mrb[0].mxu0
        %v675 = vadd.f32 %v522, %v674
        %v676 = vpop.f32.mrb[0].mxu0
        %v677 = vadd.f32 %v518, %v676
        %v678 = vpop.f32.mrb[0].mxu0
        %v679 = vadd.f32 %v522, %v678
        %680 = vmatprep.mubr.bf16.mxu0 %v630
        %681 = vmatmul.mubr.bf16.gmra.mrb[0].mxu0 %v487
        %v682 = vpop.f32.mrb[0].mxu0
        %v683 = vadd.f32 %v518, %v682
        %v684 = vpop.f32.mrb[0].mxu0
        %v685 = vadd.f32 %v522, %v684
        %v686 = vpop.f32.mrb[0].mxu0
        %v687 = vadd.f32 %v518, %v686
        %v688 = vpop.f32.mrb[0].mxu0
        %v689 = vadd.f32 %v522, %v688
        %690 = vmatprep.mubr.bf16.mxu0 %v633
        %691 = vmatmul.mubr.bf16.gmra.mrb[0].mxu0 %v489
        %v692 = vpop.f32.mrb[0].mxu0
        %v693 = vadd.f32 %v518, %v692
        %v694 = vpop.f32.mrb[0].mxu0
        %v695 = vadd.f32 %v522, %v694
        %v696 = vpop.f32.mrb[0].mxu0
        %v697 = vadd.f32 %v518, %v696
        %v698 = vpop.f32.mrb[0].mxu0
        %v699 = vadd.f32 %v522, %v698
        %700 = vmatprep.mubr.bf16.mxu0 %v636
        %701 = vmatmul.mubr.bf16.gmra.mrb[0].mxu0 %v491
        %v702 = vpop.f32.mrb[0].mxu0
        %v703 = vadd.f32 %v518, %v702
        %v704 = vpop.f32.mrb[0].mxu0
        %v705 = vadd.f32 %v522, %v704
        %v706 = vpop.f32.mrb[0].mxu0
        %v707 = vadd.f32 %v518, %v706
        %v708 = vpop.f32.mrb[0].mxu0
        %v709 = vadd.f32 %v522, %v708
        %710 = vdwg.mxu0
        %v711 = vmax.f32 %v673, 0.0
        %v712 = vmax.f32 %v675, 0.0
        %v713 = vmax.f32 %v677, 0.0
        %v714 = vmax.f32 %v679, 0.0
        %v715 = vmax.f32 %v683, 0.0
        %v716 = vmax.f32 %v685, 0.0
        %v717 = vmax.f32 %v687, 0.0
        %v718 = vmax.f32 %v689, 0.0
        %v719 = vmax.f32 %v693, 0.0
        %v720 = vmax.f32 %v695, 0.0
        %v721 = vmax.f32 %v697, 0.0
        %v722 = vmax.f32 %v699, 0.0
        %v723 = vmax.f32 %v703, 0.0
        %v724 = vmax.f32 %v705, 0.0
        %v725 = vmax.f32 %v707, 0.0
        %v726 = vmax.f32 %v709, 0.0
        %v727 = vrot.slane %v711, 4
        %v728 = vadd.f32 %v711, %v727
        %v729 = vrot.slane %v728, 2
        %v730 = vadd.f32 %v728, %v729
        %v731 = vrot.slane %v730, 1
        %v732 = vadd.f32 %v730, %v731
        %v733 = vsel %vm625, %v712, 0.0
        %v734 = vrot.slane %v733, 4
        %v735 = vadd.f32 %v733, %v734
        %v736 = vrot.slane %v735, 2
        %v737 = vadd.f32 %v735, %v736
        %v738 = vrot.slane %v737, 1
        %v739 = vadd.f32 %v737, %v738
        %v740 = vrot.slane %v713, 4
        %v741 = vadd.f32 %v713, %v740
        %v742 = vrot.slane %v741, 2
        %v743 = vadd.f32 %v741, %v742
        %v744 = vrot.slane %v743, 1
        %v745 = vadd.f32 %v743, %v744
        %v746 = vsel %vm625, %v714, 0.0
        %v747 = vrot.slane %v746, 4
        %v748 = vadd.f32 %v746, %v747
        %v749 = vrot.slane %v748, 2
        %v750 = vadd.f32 %v748, %v749
        %v751 = vrot.slane %v750, 1
        %v752 = vadd.f32 %v750, %v751
        %v753 = vrot.slane %v715, 4
        %v754 = vadd.f32 %v715, %v753
        %v755 = vrot.slane %v754, 2
        %v756 = vadd.f32 %v754, %v755
        %v757 = vrot.slane %v756, 1
        %v758 = vadd.f32 %v756, %v757
        %v759 = vsel %vm625, %v716, 0.0
        %v760 = vrot.slane %v759, 4
        %v761 = vadd.f32 %v759, %v760
        %v762 = vrot.slane %v761, 2
        %v763 = vadd.f32 %v761, %v762
        %v764 = vrot.slane %v763, 1
        %v765 = vadd.f32 %v763, %v764
        %v766 = vrot.slane %v717, 4
        %v767 = vadd.f32 %v717, %v766
        %v768 = vrot.slane %v767, 2
        %v769 = vadd.f32 %v767, %v768
        %v770 = vrot.slane %v769, 1
        %v771 = vadd.f32 %v769, %v770
        %v772 = vsel %vm625, %v718, 0.0
        %v773 = vrot.slane %v772, 4
        %v774 = vadd.f32 %v772, %v773
        %v775 = vrot.slane %v774, 2
        %v776 = vadd.f32 %v774, %v775
        %v777 = vrot.slane %v776, 1
        %v778 = vadd.f32 %v776, %v777
        %v779 = vrot.slane %v719, 4
        %v780 = vadd.f32 %v719, %v779
        %v781 = vrot.slane %v780, 2
        %v782 = vadd.f32 %v780, %v781
        %v783 = vrot.slane %v782, 1
        %v784 = vadd.f32 %v782, %v783
        %v785 = vsel %vm625, %v720, 0.0
        %v786 = vrot.slane %v785, 4
        %v787 = vadd.f32 %v785, %v786
        %v788 = vrot.slane %v787, 2
        %v789 = vadd.f32 %v787, %v788
        %v790 = vrot.slane %v789, 1
        %v791 = vadd.f32 %v789, %v790
        %v792 = vrot.slane %v721, 4
        %v793 = vadd.f32 %v721, %v792
        %v794 = vrot.slane %v793, 2
        %v795 = vadd.f32 %v793, %v794
        %v796 = vrot.slane %v795, 1
        %v797 = vadd.f32 %v795, %v796
        %v798 = vsel %vm625, %v722, 0.0
        %v799 = vrot.slane %v798, 4
        %v800 = vadd.f32 %v798, %v799
        %v801 = vrot.slane %v800, 2
        %v802 = vadd.f32 %v800, %v801
        %v803 = vrot.slane %v802, 1
        %v804 = vadd.f32 %v802, %v803
        %v805 = vrot.slane %v723, 4
        %v806 = vadd.f32 %v723, %v805
        %v807 = vrot.slane %v806, 2
        %v808 = vadd.f32 %v806, %v807
        %v809 = vrot.slane %v808, 1
        %v810 = vadd.f32 %v808, %v809
        %v811 = vsel %vm625, %v724, 0.0
        %v812 = vrot.slane %v811, 4
        %v813 = vadd.f32 %v811, %v812
        %v814 = vrot.slane %v813, 2
        %v815 = vadd.f32 %v813, %v814
        %v816 = vrot.slane %v815, 1
        %v817 = vadd.f32 %v815, %v816
        %v818 = vrot.slane %v725, 4
        %v819 = vadd.f32 %v725, %v818
        %v820 = vrot.slane %v819, 2
        %v821 = vadd.f32 %v819, %v820
        %v822 = vrot.slane %v821, 1
        %v823 = vadd.f32 %v821, %v822
        %v824 = vsel %vm625, %v726, 0.0
        %v825 = vrot.slane %v824, 4
        %v826 = vadd.f32 %v824, %v825
        %v827 = vrot.slane %v826, 2
        %v828 = vadd.f32 %v826, %v827
        %v829 = vrot.slane %v828, 1
        %v830 = vadd.f32 %v828, %v829
        %v831 = vld [vmem:[#allocation5] sm:$0xff]
        %v832 = vld [vmem:[#allocation5 + $0x8] sm:$0xff]
        %v833 = vld [vmem:[#allocation5 + $0x10] sm:$0xff]
        %v834 = vld [vmem:[#allocation5 + $0x18] sm:$0xff]
        %v835 = vld [vmem:[#allocation5 + $0x20] sm:$0xff]
        %v836 = vld [vmem:[#allocation5 + $0x28] sm:$0xff]
        %v837 = vld [vmem:[#allocation5 + $0x30] sm:$0xff]
        %v838 = vld [vmem:[#allocation5 + $0x38] sm:$0xff]
        %v839 = vld [vmem:[#allocation5 + $0x40] sm:$0xff]
        %v840 = vld [vmem:[#allocation5 + $0x48] sm:$0xff]
        %v841 = vld [vmem:[#allocation5 + $0x50] sm:$0xff]
        %v842 = vld [vmem:[#allocation5 + $0x58] sm:$0xff]
        %v843 = vld [vmem:[#allocation5 + $0x60] sm:$0xff]
        %v844 = vld [vmem:[#allocation5 + $0x68] sm:$0xff]
        %v845 = vld [vmem:[#allocation5 + $0x70] sm:$0xff]
        %v846 = vld [vmem:[#allocation5 + $0x78] sm:$0xff]
        %v847 = vld [vmem:[#allocation5 + $0x80] sm:$0xff]
        %v848 = vld [vmem:[#allocation5 + $0x88] sm:$0xff]
        %v849 = vld [vmem:[#allocation5 + $0x90] sm:$0xff]
        %v850 = vld [vmem:[#allocation5 + $0x98] sm:$0xff]
        %v851 = vld [vmem:[%s6] sm:$0x1]
        %v853 = vlaneseq
        %v854 = vshrl.u32 %v853, 7
        %v855 = vsub.s32 0, %v854
        %v856 = vrot.slane %v851, %v855
        %vm874 = vcmask 1041409
        %v875 = vsel %vm874, %v745, %v732
        %vm876 = vcmask 1042434
        %v877 = vsel %vm876, %v758, %v875
        %vm878 = vcmask 1043459
        %v879 = vsel %vm878, %v771, %v877
        %vm880 = vcmask 1044484
        %v881 = vsel %vm880, %v784, %v879
        %vm882 = vcmask 1045509
        %v883 = vsel %vm882, %v797, %v881
        %vm884 = vcmask 1046534
        %v885 = vsel %vm884, %v810, %v883
        %vm886 = vcmask 1047559
        %v887 = vsel %vm886, %v823, %v885
        %v888 = vsel %vm874, %v752, %v739
        %v889 = vsel %vm876, %v765, %v888
        %v890 = vsel %vm878, %v778, %v889
        %v891 = vsel %vm880, %v791, %v890
        %v892 = vsel %vm882, %v804, %v891
        %v893 = vsel %vm884, %v817, %v892
        %v894 = vsel %vm886, %v830, %v893
        %v896 = vsel %vm625, %v894, 0
        %898 = vmatprep.subr.mxu0 0.0
        %899 = vmatpush1.msra.mxu0 %v831
        %900 = vmatprep.subr.mxu0 0.0
        %901 = vmatpush1.msra.mxu0 %v832
        %902 = vmatprep.subr.mxu0 0.0
        %903 = vmatpush1.msra.mxu0 %v833
        %904 = vmatprep.subr.mxu0 0.0
        %905 = vmatpush1.msra.mxu0 %v834
        %906 = vmatprep.subr.mxu0 0.0
        %907 = vmatpush1.msra.mxu0 %v835
        %908 = vmatprep.subr.mxu0 0.0
        %909 = vmatpush1.msra.mxu0 %v836
        %910 = vmatprep.subr.mxu0 0.0
        %911 = vmatpush1.msra.mxu0 %v837
        %912 = vmatprep.subr.mxu0 0.0
        %913 = vmatpush1.msra.mxu0 %v838
        %914 = vmatprep.subr.mxu0 0.0
        %915 = vmatpush1.msra.mxu0 %v839
        %916 = vmatprep.subr.mxu0 0.0
        %917 = vmatpush1.msra.mxu0 %v840
        %918 = vmatprep.subr.mxu0 0.0
        %919 = vmatpush1.msra.mxu0 %v841
        %920 = vmatprep.subr.mxu0 0.0
        %921 = vmatpush1.msra.mxu0 %v842
        %922 = vmatprep.subr.mxu0 0.0
        %923 = vmatpush1.msra.mxu0 %v843
        %924 = vmatprep.subr.mxu0 0.0
        %925 = vmatpush1.msra.mxu0 %v844
        %926 = vmatprep.subr.mxu0 0.0
        %927 = vmatpush1.msra.mxu0 %v845
        %928 = vmatprep.subr.mxu0 0.0
        %929 = vmatpush1.msra.mxu0 %v846
        %930 = vmatprep.subr.mxu0 0.0
        %931 = vmatpush1.msra.mxu0 %v847
        %932 = vmatprep.subr.mxu0 0.0
        %933 = vmatpush1.msra.mxu0 %v848
        %934 = vmatprep.subr.mxu0 0.0
        %935 = vmatpush1.msra.mxu0 %v849
        %936 = vmatprep.subr.mxu0 0.0
        %937 = vmatpush1.msra.mxu0 %v850
        %938 = vmatprep.subr.mxu0 0.0
        %939 = vmatpush1.msra.mxu0 0.0
        %940 = vmatprep.subr.mxu0 0.0
        %941 = vmatpush1.msra.mxu0 0.0
        %942 = vmatprep.subr.mxu0 0.0
        %943 = vmatpush1.msra.mxu0 0.0
        %944 = vmatprep.subr.mxu0 0.0
        %945 = vmatpush1.msra.mxu0 0.0
        %946 = vmatprep.subr.mxu0 0.0
        %947 = vmatpush1.msra.mxu0 0.0
        %948 = vmatprep.subr.mxu0 0.0
        %949 = vmatpush1.msra.mxu0 0.0
        %950 = vmatprep.subr.mxu0 0.0
        %951 = vmatpush1.msra.mxu0 0.0
        %952 = vmatprep.subr.mxu0 0.0
        %953 = vmatpush1.msra.mxu0 0.0
        %954 = vmatprep.subr.mxu0 0.0
        %955 = vmatpush1.msra.mxu0 0.0
        %956 = vmatprep.subr.mxu0 0.0
        %957 = vmatpush1.msra.mxu0 0.0
        %958 = vmatprep.subr.mxu0 0.0
        %959 = vmatpush1.msra.mxu0 0.0
        %960 = vmatprep.subr.mxu0 0.0
        %961 = vmatpush1.msra.mxu0 0.0
        %962 = vmatprep.mubr.f32.mxu0 %v896
        %963 = vmatmul.mubr.f32.gmra.mrb[0].mxu0 %v887
        %v964 = vpop.f32.mrb[0].mxu0
        %v965 = vadd.f32 %v856, %v964
        %v966 = vpop.f32.mrb[0].mxu0
        %967 = vdwg.mxu0
        %vm968 = vcmask 654336
        %969 = vst.msk [vmem:[%s302] sm:$0xff] %vm968, %v965
        %s970 = sand.u32 %s183, 1
        %s971 = scalar_lea.sflag [#allocation4], %s970
        %s972 = sand.u32 %s183, 1
        %s973 = smul.addr %s972, 8
        %s974 = scalar_lea.vmem [#allocation7], %s973
        // Predicated region
        $region57: #{tpu_custom_call.1} parent=47 // pred_check
          %p975 = pneg %p193
        $region58: #{tpu_custom_call.1} parent=47 // pred_check_branch
          %977 = sbr.rel (%p975) target = $region60
        $region59: #{tpu_custom_call.1} parent=47 // pred_region
          %s979 = ssub.s32 128, 128
          %980 = vsyncadd %s971, %s979
          %s981 = smul.addr %s23, 128
          %s982 = scalar_lea.hbm %s7, %s981
          %s984 = sshll.u32 %s974, 4
          %s985 = int_to_ptr.vmem [resolvable:$true] %s984
          %987 = dma.vmem_to_hbm [thread:$0]  %s985, 128, %s982, %s971
        $region60: #{tpu_custom_call.1} parent=47 // pred_fallthru
          _
      $region48: #{tpu_custom_call.1} parent=5 // pred_fallthru
        _
      %p988 = scmp.le.s32.totalorder 2, %s18
      // Predicated region
      $region61: #{tpu_custom_call.1} parent=5 // pred_check
        %p989 = pneg %p988
      $region62: #{tpu_custom_call.1} parent=5 // pred_check_branch
        %991 = sbr.rel (%p989) target = $region64
      $region63: #{tpu_custom_call.1} parent=5 // pred_region
        %s992 = ssub.s32 %s18, 2
        // Predicated region
        $region65: #{tpu_custom_call.1} parent=63 // pred_check
          %p993 = pneg %p199
        $region66: #{tpu_custom_call.1} parent=63 // pred_check_branch
          %995 = sbr.rel (%p993) target = $region68
        $region67: #{tpu_custom_call.1} parent=63 // pred_region
          %s996 = sand.u32 %s184, 1
          %s997 = scalar_lea.sflag [#allocation4], %s996
          %s998 = sand.u32 %s184, 1
          %s999 = smul.addr %s998, 8
          %s1000 = scalar_lea.vmem [#allocation7], %s999
          %1001 = dma.done %s997, 128
        $region68: #{tpu_custom_call.1} parent=63 // pred_fallthru
          _
      $region64: #{tpu_custom_call.1} parent=5 // pred_fallthru
        _
    $region6: #{tpu_custom_call.1} parent=1 // loop_footer
      %s22 = sadd.s32 1, %s18
    $region7: #{tpu_custom_call.1} parent=1 // loop_footer_branch
      %17 = sbr.rel target = $region3
    $region8: #{tpu_custom_call.1} parent=1 // loop_exit
      _
    %1002 = vsyncpa [#allocation3], 1
    %s1003 = scalar_lea.sflag [#allocation3], 1
    %1004 = vsyncpa %s1003, 1
    %1005 = vsyncpa [#allocation6], 1
    %1006 = vsyncpa [#allocation4], 1
    %s1007 = scalar_lea.sflag [#allocation4], 1
    %1008 = vsyncpa %s1007, 1

</llo_original>
